<compile_context>
chip_gen: v7x
topology: tpu7x:2x2x1
jax: 0.10.0
libtpu: 0.0.40
codegen_flags: <defaults>
</compile_context>

<pallas_src>
import math
import functools

import jax
import jax.numpy as jnp
from jax.experimental import pallas as pl
from jax.experimental.pallas import tpu as pltpu


# --------------------------------------------------------------------------- #
# Kernels
# --------------------------------------------------------------------------- #
def _make_linear_kernel(has_bias, precision):
    """Build the (i, j, k) grid-step kernel, with or without a bias operand.

    x_ref:   (tm, tk)  activation tile
    w_ref:   (tk, tn)  weight tile, already in (in_features, out_features) layout
    b_ref:   (1, tn)   bias row tile (only when has_bias)
    o_ref:   (tm, tn)  output tile (written on the last k step only)
    acc_ref: (tm, tn)  f32 VMEM accumulator, resident across the k axis
    """

    def _dot(x, w):
        # Plain last-dim x first-dim contraction -> no in-kernel weight
        # transpose (the wrapper already hands us W^T).
        return jnp.dot(x, w, preferred_element_type=jnp.float32,
                       precision=precision)

    if has_bias:
        def kernel(x_ref, w_ref, b_ref, o_ref, acc_ref):
            @pl.when(pl.program_id(2) == 0)
            def _init():
                acc_ref[...] = jnp.zeros_like(acc_ref)

            acc_ref[...] += _dot(x_ref[...], w_ref[...])

            @pl.when(pl.program_id(2) == pl.num_programs(2) - 1)
            def _finalize():
                o_ref[...] = (acc_ref[...]
                              + b_ref[...].astype(jnp.float32)).astype(o_ref.dtype)
    else:
        def kernel(x_ref, w_ref, o_ref, acc_ref):
            @pl.when(pl.program_id(2) == 0)
            def _init():
                acc_ref[...] = jnp.zeros_like(acc_ref)

            acc_ref[...] += _dot(x_ref[...], w_ref[...])

            @pl.when(pl.program_id(2) == pl.num_programs(2) - 1)
            def _finalize():
                o_ref[...] = acc_ref[...].astype(o_ref.dtype)

    return kernel


# --------------------------------------------------------------------------- #
# Tile selection helpers (all trace-time Python)
# --------------------------------------------------------------------------- #
def _round_up(x, m):
    return -(-x // m) * m


@functools.lru_cache(maxsize=1)
def _tile_budget():
    """(tm_max, tn_max, tk_max, vmem_limit_bytes), chosen per TPU generation.

    Roofline targets (bf16): v5e ~120 MAC/B, v6e ~340 MAC/B, v7x ~155 MAC/B.
    v7x has only 64 MiB VMEM per TensorCore, so its budget is smaller than v6e.
    """
    kind = ""
    try:
        kind = jax.devices()[0].device_kind.lower()
    except Exception:
        pass
    if ("v5 lite" in kind) or ("v5e" in kind) or ("v5lite" in kind):
        return 512, 512, 1024, 64 * 1024 * 1024       # v5e (128 MiB physical VMEM)
    if "v6" in kind:
        return 1024, 1024, 1024, 96 * 1024 * 1024     # v6e (128 MiB physical VMEM)
    if "7" in kind:
        return 512, 1024, 1024, 48 * 1024 * 1024      # v7x (64 MiB VMEM / TC)
    return 512, 512, 512, 48 * 1024 * 1024            # unknown / older: conservative


def _largest_dividing_multiple(dim, unit, cap):
    """Largest multiple of `unit` that divides `dim` and is <= cap (unit | dim)."""
    t = (min(cap, dim) // unit) * unit
    while t > unit:
        if dim % t == 0:
            return t
        t -= unit
    return unit


def _pick_row_tile(M, tm_max, sublane):
    """Equal-sized row tiles with minimal padding. Returns (tm, M_pad)."""
    M_al = _round_up(M, sublane)
    if M_al <= tm_max:
        return M_al, M_al                    # whole batch in one tile, no waste
    g = -(-M_al // tm_max)                   # number of row tiles
    tm = _round_up(-(-M_al // g), sublane)   # near-equal tiles, pad < g*sublane rows
    return tm, tm * g


def _pick_col_tile(N, tn_max):
    """Output-feature tile. Returns (tn, N_pad); avoids padding W when possible."""
    if N <= tn_max:
        return N, N                          # full-extent tile, no HBM pad of W/bias
    if N % 128 == 0:
        return _largest_dividing_multiple(N, 128, tn_max), N
    # Rare fallback: lane-pad N (one extra HBM pass over the weight).
    N_pad = _round_up(N, 128)
    return _largest_dividing_multiple(N_pad, 128, tn_max), N_pad


def _pick_red_tile(K, tk_max):
    """Reduction tile. Returns (tk, K_pad)."""
    if K <= tk_max:
        return K, K
    if K % 128 == 0:
        return _largest_dividing_multiple(K, 128, tk_max), K
    K_pad = _round_up(K, 128)
    return _largest_dividing_multiple(K_pad, 128, tk_max), K_pad


# --------------------------------------------------------------------------- #
# Public forward
# --------------------------------------------------------------------------- #
@functools.partial(
    jax.jit,
    static_argnames=("compute_dtype", "transposed_weight", "tile_override",
                     "precision"))
def zero3_linear_forward(x, weight, bias=None, *, compute_dtype=None,
                         transposed_weight=False, tile_override=None,
                         precision=None):
    """y = x @ weight.T + bias.

    weight: (out_features, in_features), matching LinearModuleForZeroStage3.
            Pass transposed_weight=True if the caller already holds the weight
            as (in_features, out_features) (e.g. the ZeRO-3 all-gather lands it
            transposed) to skip the wrapper-side HBM transpose pass entirely.
    compute_dtype: optional MXU operand dtype (e.g. jnp.bfloat16); accumulation
            stays in f32 and the output keeps x.dtype.
    tile_override: (tm_max, tn_max, tk_max) to override the generation-aware
            tile budget (mainly for testing).
    """
    if transposed_weight:
        in_features, out_features = weight.shape
    else:
        out_features, in_features = weight.shape
    assert x.shape[-1] == in_features, "last dim of x must equal in_features"

    out_dtype = x.dtype
    cdtype = jnp.dtype(compute_dtype) if compute_dtype is not None else jnp.dtype(x.dtype)

    lead_shape = x.shape[:-1]
    M = math.prod(lead_shape)
    x2d = x.reshape(M, in_features)

    budget = _tile_budget()
    vmem_limit = budget[3]
    tm_max, tn_max, tk_max = tile_override if tile_override is not None else budget[:3]

    sublane = {4: 8, 2: 16, 1: 32}.get(cdtype.itemsize, 8)
    tm, M_pad = _pick_row_tile(M, tm_max, sublane)
    tn, N_pad = _pick_col_tile(out_features, tn_max)
    tk, K_pad = _pick_red_tile(in_features, tk_max)

    # One fused HBM pass over the weight (transpose + optional cast/pad) so the
    # kernel contracts (tm,tk)x(tk,tn) with no per-k-step XLU tile relayout.
    w_t = weight if transposed_weight else weight.T          # (K, N)
    if w_t.dtype != cdtype:
        w_t = w_t.astype(cdtype)
    if (K_pad, N_pad) != (in_features, out_features):
        w_t = jnp.pad(w_t, ((0, K_pad - in_features), (0, N_pad - out_features)))

    if x2d.dtype != cdtype:
        x2d = x2d.astype(cdtype)
    if (M_pad, K_pad) != (M, in_features):
        x2d = jnp.pad(x2d, ((0, M_pad - M), (0, K_pad - in_features)))

    grid = (M_pad // tm, N_pad // tn, K_pad // tk)

    # NOTE: on v5e, pl.BlockSpec(..., pipeline_mode=pl.Buffered(3)) on the
    # weight spec can additionally hide (i, j)-boundary DMA bursts once tiles
    # are this large; left at the default double-buffering here.
    in_specs = [
        pl.BlockSpec((tm, tk), lambda i, j, k: (i, k)),   # x tile
        pl.BlockSpec((tk, tn), lambda i, j, k: (k, j)),   # W^T tile (K, N layout)
    ]
    operands = [x2d, w_t]

    has_bias = bias is not None
    if has_bias:
        b2d = bias.reshape(1, out_features)
        if N_pad != out_features:
            b2d = jnp.pad(b2d, ((0, 0), (0, N_pad - out_features)))
        in_specs.append(pl.BlockSpec((1, tn), lambda i, j, k: (0, j)))
        operands.append(b2d)

    kernel = _make_linear_kernel(has_bias, precision)

    out = pl.pallas_call(
        kernel,
        out_shape=jax.ShapeDtypeStruct((M_pad, N_pad), out_dtype),
        grid_spec=pltpu.PrefetchScalarGridSpec(
            num_scalar_prefetch=0,
            grid=grid,
            in_specs=in_specs,
            out_specs=pl.BlockSpec((tm, tn), lambda i, j, k: (i, j)),
            scratch_shapes=[pltpu.VMEM((tm, tn), jnp.float32)],
        ),
        compiler_params=pltpu.CompilerParams(
            dimension_semantics=("parallel", "parallel", "arbitrary"),
            vmem_limit_bytes=vmem_limit),
    )(*operands)

    out = out[:M, :out_features]
    return out.reshape(*lead_shape, out_features)


# --------------------------------------------------------------------------- #
# Parameter init matching LinearModuleForZeroStage3.reset_parameters()
# --------------------------------------------------------------------------- #
def init_zero3_linear_params(key, in_features, out_features, bias=True,
                             dtype=jnp.float32):
    """kaiming_uniform_(a=sqrt(5)) on weight and uniform bias, both reduce to
    U(-1/sqrt(fan_in), 1/sqrt(fan_in))."""
    k_w, k_b = jax.random.split(key)
    bound = 1.0 / math.sqrt(in_features)
    weight = jax.random.uniform(
        k_w, (out_features, in_features), dtype=dtype, minval=-bound, maxval=bound)
    b = None
    if bias:
        b = jax.random.uniform(
            k_b, (out_features,), dtype=dtype, minval=-bound, maxval=bound)
    return weight, b


def _ref_forward(x, weight, bias):
    y = jnp.einsum("...i,oi->...o", x, weight,
                   precision=jax.lax.Precision.HIGHEST)
    if bias is not None:
        y = y + bias
    return y


# TODO(synk): the autograd plumbing of LinearFunctionForZeroStage3 (tensor_map
# bookkeeping, ctx.save_for_backward, backward pass, torch autocast decorators)
# is training-framework glue with no forward-pass Pallas equivalent.

if __name__ == "__main__":
    key = jax.random.PRNGKey(0)
    k_x, k_p, k_x2, k_p2 = jax.random.split(key, 4)

    # Tolerances are documented loose: the MXU default precision for f32
    # operands may use bf16-based passes (pass precision=HIGHEST for parity).
    ATOL = RTOL = 1e-2

    # 1) Small module-shaped input (N, *, H_in): batch=2, seq=8, hidden 32 -> 48.
    batch, seq, in_f, out_f = 2, 8, 32, 48
    x = jax.random.normal(k_x, (batch, seq, in_f), dtype=jnp.float32)
    w, b = init_zero3_linear_params(k_p, in_f, out_f, bias=True)
    y = jax.block_until_ready(zero3_linear_forward(x, w, b))
    y_ref = _ref_forward(x, w, b)
    assert y.shape == (batch, seq, out_f)
    assert jnp.allclose(y, y_ref, atol=ATOL, rtol=RTOL), "mismatch (small)"

    # 2) Force the fully tiled M/N/K path (+ row padding) with small shapes.
    M2, K2, N2 = 260, 384, 256
    x2 = jax.random.normal(k_x2, (M2, K2), dtype=jnp.float32)
    w2, b2 = init_zero3_linear_params(k_p2, K2, N2, bias=True)
    y2 = jax.block_until_ready(
        zero3_linear_forward(x2, w2, b2, tile_override=(128, 128, 128)))
    y2_ref = _ref_forward(x2, w2, b2)
    assert y2.shape == (M2, N2)
    assert jnp.allclose(y2, y2_ref, atol=ATOL, rtol=RTOL), "mismatch (tiled)"

    # 3) Default generation-aware tiles + bias=None kernel variant.
    y3 = jax.block_until_ready(zero3_linear_forward(x2, w2, None))
    y3_ref = _ref_forward(x2, w2, None)
    assert jnp.allclose(y3, y3_ref, atol=ATOL, rtol=RTOL), "mismatch (no bias)"

    # 4) bf16 compute path: f32 in/out, bf16 MXU operands, f32 accumulation.
    y4 = jax.block_until_ready(
        zero3_linear_forward(x2, w2, b2, compute_dtype=jnp.bfloat16))
    assert jnp.allclose(y4, y2_ref, atol=3e-2, rtol=3e-2), "mismatch (bf16)"

    print("KERNEL_OK")
</pallas_src>

<mosaic_0001>
module attributes {stable_mosaic.version = 11 : i64} {
  func.func @kernel(%arg0: i32, %arg1: i32, %arg2: i32, %arg3: memref<16x32xf32, #tpu.memory_space<vmem>>, %arg4: memref<32x48xf32, #tpu.memory_space<vmem>>, %arg5: memref<1x48xf32, #tpu.memory_space<vmem>>, %arg6: memref<16x48xf32, #tpu.memory_space<vmem>>, %arg7: memref<16x48xf32, #tpu.memory_space<vmem>>) attributes {dimension_semantics = [#tpu.dimension_semantics<parallel>, #tpu.dimension_semantics<parallel>, #tpu.dimension_semantics<arbitrary>], iteration_bounds = array<i64: 1, 1, 1>, scalar_prefetch = 0 : i64, scratch_operands = 1 : i64, tpu.core_type = #tpu.core_type<tc>, window_params = [{transform_indices = @transform_0, window_bounds = array<i64: 16, 32>}, {transform_indices = @transform_1, window_bounds = array<i64: 32, 48>}, {transform_indices = @transform_2, window_bounds = array<i64: 1, 48>}, {transform_indices = @transform_3, window_bounds = array<i64: 16, 48>}]} {
    %c0_i32 = arith.constant 0 : i32
    %0 = arith.cmpi eq, %arg2, %c0_i32 : i32
    %1 = arith.extui %0 : i1 to i32
    %c0_i32_0 = arith.constant 0 : i32
    %2 = arith.cmpi ne, %1, %c0_i32_0 : i32
    scf.if %2 {
      %cst_10 = arith.constant 0.000000e+00 : f32
      %12 = vector.broadcast %cst_10 : f32 to vector<16x48xf32>
      %c0_11 = arith.constant 0 : index
      %c0_12 = arith.constant 0 : index
      %13 = vector.load %arg7[%c0_11, %c0_12] : memref<16x48xf32, #tpu.memory_space<vmem>>, vector<16x48xf32>
      tpu.vector_store %arg7[%c0_11, %c0_12], %12 {strides = array<i32>} : memref<16x48xf32, #tpu.memory_space<vmem>>, vector<16x48xf32>,
    } else {
    }
    %c0 = arith.constant 0 : index
    %c0_1 = arith.constant 0 : index
    %3 = vector.load %arg7[%c0, %c0_1] : memref<16x48xf32, #tpu.memory_space<vmem>>, vector<16x48xf32>
    %c0_2 = arith.constant 0 : index
    %c0_3 = arith.constant 0 : index
    %4 = vector.load %arg3[%c0_2, %c0_3] : memref<16x32xf32, #tpu.memory_space<vmem>>, vector<16x32xf32>
    %c0_4 = arith.constant 0 : index
    %c0_5 = arith.constant 0 : index
    %5 = vector.load %arg4[%c0_4, %c0_5] : memref<32x48xf32, #tpu.memory_space<vmem>>, vector<32x48xf32>
    %cst = arith.constant dense<0.000000e+00> : vector<16x48xf32>
    %6 = tpu.matmul %4, %5, %cst {dimension_numbers = #tpu.dot_dimension_numbers<[1], [0], [0], [1], [0, 0, 1, 1], [], []>} : vector<16x32xf32>, vector<32x48xf32>, vector<16x48xf32> -> vector<16x48xf32>
    %7 = arith.addf %3, %6 : vector<16x48xf32>
    %c0_6 = arith.constant 0 : index
    %c0_7 = arith.constant 0 : index
    %8 = vector.load %arg7[%c0_6, %c0_7] : memref<16x48xf32, #tpu.memory_space<vmem>>, vector<16x48xf32>
    tpu.vector_store %arg7[%c0_6, %c0_7], %7 {strides = array<i32>} : memref<16x48xf32, #tpu.memory_space<vmem>>, vector<16x48xf32>,
    %c0_i32_8 = arith.constant 0 : i32
    %9 = arith.cmpi eq, %arg2, %c0_i32_8 : i32
    %10 = arith.extui %9 : i1 to i32
    %c0_i32_9 = arith.constant 0 : i32
    %11 = arith.cmpi ne, %10, %c0_i32_9 : i32
    scf.if %11 {
      %c0_10 = arith.constant 0 : index
      %c0_11 = arith.constant 0 : index
      %12 = vector.load %arg7[%c0_10, %c0_11] : memref<16x48xf32, #tpu.memory_space<vmem>>, vector<16x48xf32>
      %c0_12 = arith.constant 0 : index
      %c0_13 = arith.constant 0 : index
      %13 = vector.load %arg5[%c0_12, %c0_13] : memref<1x48xf32, #tpu.memory_space<vmem>>, vector<1x48xf32>
      %14 = vector.broadcast %13 : vector<1x48xf32> to vector<16x48xf32>
      %15 = arith.addf %12, %14 : vector<16x48xf32>
      %c0_14 = arith.constant 0 : index
      %c0_15 = arith.constant 0 : index
      %16 = vector.load %arg6[%c0_14, %c0_15] : memref<16x48xf32, #tpu.memory_space<vmem>>, vector<16x48xf32>
      tpu.vector_store %arg6[%c0_14, %c0_15], %15 {strides = array<i32>} : memref<16x48xf32, #tpu.memory_space<vmem>>, vector<16x48xf32>,
    } else {
    }
    return
  }
  func.func @transform_0(%arg0: i32, %arg1: i32, %arg2: i32) -> (i32, i32) {
    %c0_i32 = arith.constant 0 : i32
    return %arg0, %arg2 : i32, i32
  }
  func.func @transform_1(%arg0: i32, %arg1: i32, %arg2: i32) -> (i32, i32) {
    %c0_i32 = arith.constant 0 : i32
    return %arg2, %arg1 : i32, i32
  }
  func.func @transform_2(%arg0: i32, %arg1: i32, %arg2: i32) -> (i32, i32) {
    %c0_i32 = arith.constant 0 : i32
    %c0_i32_0 = arith.constant 0 : i32
    return %c0_i32, %arg1 : i32, i32
  }
  func.func @transform_3(%arg0: i32, %arg1: i32, %arg2: i32) -> (i32, i32) {
    %c0_i32 = arith.constant 0 : i32
    return %arg0, %arg1 : i32, i32
  }
}

</mosaic_0001>

<llo_original>
// kernel: zero3_linear_forward.1
$region0: #{zero3_linear_forward.1}
  #allocation0 [shape = 'u32[]', space=smem, size = 0x4, offset = 0x4, fixed_abs, tag = 'smem constant byte address 0x4 - core index']
  #allocation1 [shape = 'u32[144,128]{1,0:T(1,128)}', space=vmem, size = 0x12000, scoped, tag = 'internal scratch']
  #allocation2 [shape = 'f32[16,48]{1,0:T(8,128)}', space=vmem, size = 0x2000, scoped, tag = 'scratch operand']
  %s0 = inlined_call_operand.hbm [shape: f32[16,32], index: 0, kind: input, shape index: {}]
  %s1 = inlined_call_operand.hbm [shape: f32[32,48], index: 1, kind: input, shape index: {}]
  %s2 = inlined_call_operand.vmem [shape: f32[1,48], index: 2, kind: input, shape index: {}]
  %s3 = inlined_call_operand.hbm [shape: f32[16,48], index: 3, kind: output, shape index: {}]
  %s4 = sld [smem:[#allocation0]]
  $region38: #{zero3_linear_forward.1} parent=0
    _
  %s6 = ssub.s32 1, %s4
  %s7 = scalar_select 0, %s6, %s4
  $region1: #{zero3_linear_forward.1} parent=0
    #allocation3 [shape = 'u8[8192]{0}', space=vmem, size = 0x2000, scoped, tag = 'input window, operand 0, single buffered']
    #allocation4 [shape = 's32[1]{0}', space=sflag, size = 0x4, scoped, tag = 'scoped memory for zero3_linear_forward.1']
    #allocation5 [shape = 's32[1]{0}', space=sflag, size = 0x4, scoped, tag = 'scoped memory for zero3_linear_forward.1']
    #allocation6 [shape = 'u8[16384]{0}', space=vmem, size = 0x4000, scoped, tag = 'input window, operand 1, single buffered']
    #allocation7 [shape = 's32[1]{0}', space=sflag, size = 0x4, scoped, tag = 'scoped memory for zero3_linear_forward.1']
    #allocation8 [shape = 'u8[8192]{0}', space=vmem, size = 0x2000, scoped, tag = 'output window, operand 0, single buffered']
    %8 = vsyncpa [#allocation4], 0
    %9 = vsyncpa [#allocation7], 0
    %10 = vsyncpa [#allocation5], 0
    // Predicated region
    $region2: #{zero3_linear_forward.1} parent=1 // pred_check
      _
    $region3: #{zero3_linear_forward.1} parent=1 // pred_check_branch
      %12 = sbr.rel (0) target = $region5
    $region4: #{zero3_linear_forward.1} parent=1 // pred_region
      %s14 = ssub.s32 256, 256
      %15 = vsyncadd [#allocation4], %s14
      %s16 = sshll.u32 [#allocation3], 4
      %s17 = int_to_ptr.vmem [resolvable:$true] %s16
      %22 = dma.hbm_to_vmem [thread:$0]  %s0, 256, %s17, [#allocation4], 128, 128, 8
    $region5: #{zero3_linear_forward.1} parent=1 // pred_fallthru
      _
    // Predicated region
    $region6: #{zero3_linear_forward.1} parent=1 // pred_check
      _
    $region7: #{zero3_linear_forward.1} parent=1 // pred_check_branch
      %24 = sbr.rel (0) target = $region9
    $region8: #{zero3_linear_forward.1} parent=1 // pred_region
      %s26 = ssub.s32 512, 512
      %27 = vsyncadd [#allocation7], %s26
      %s28 = sshll.u32 [#allocation6], 4
      %s29 = int_to_ptr.vmem [resolvable:$true] %s28
      %34 = dma.hbm_to_vmem [thread:$0]  %s1, 512, %s29, [#allocation7], 128, 128, 8
    $region9: #{zero3_linear_forward.1} parent=1 // pred_fallthru
      _
    // Predicated region
    $region10: #{zero3_linear_forward.1} parent=1 // pred_check
      _
    $region11: #{zero3_linear_forward.1} parent=1 // pred_check_branch
      %36 = sbr.rel (0) target = $region13
    $region12: #{zero3_linear_forward.1} parent=1 // pred_region
      _
    $region13: #{zero3_linear_forward.1} parent=1 // pred_fallthru
      _
    // Predicated region
    $region14: #{zero3_linear_forward.1} parent=1 // pred_check
      _
    $region15: #{zero3_linear_forward.1} parent=1 // pred_check_branch
      %38 = sbr.rel (0) target = $region17
    $region16: #{zero3_linear_forward.1} parent=1 // pred_region
      %39 = dma.done [#allocation4], 256
    $region17: #{zero3_linear_forward.1} parent=1 // pred_fallthru
      _
    // Predicated region
    $region18: #{zero3_linear_forward.1} parent=1 // pred_check
      _
    $region19: #{zero3_linear_forward.1} parent=1 // pred_check_branch
      %41 = sbr.rel (0) target = $region21
    $region20: #{zero3_linear_forward.1} parent=1 // pred_region
      %42 = dma.done [#allocation7], 512
    $region21: #{zero3_linear_forward.1} parent=1 // pred_fallthru
      _
    %p43 = scmp.eq.s32.totalorder 0, 0
    // Predicated region
    $region22: #{zero3_linear_forward.1} parent=1 // pred_check
      %p44 = pneg %p43
    $region23: #{zero3_linear_forward.1} parent=1 // pred_check_branch
      %46 = sbr.rel (%p44) target = $region25
    $region24: #{zero3_linear_forward.1} parent=1 // pred_region
      %vm47 = vcmask 392192
      %48 = vst.msk [vmem:[#allocation2] sm:$0xff] %vm47, 0.0
      %49 = vst.msk [vmem:[#allocation2 + $0x8] sm:$0xff] %vm47, 0.0
    $region25: #{zero3_linear_forward.1} parent=1 // pred_fallthru
      _
    %v50 = vld [vmem:[#allocation2] sm:$0xff]
    %v51 = vld [vmem:[#allocation2 + $0x8] sm:$0xff]
    %v52 = vld [vmem:[#allocation3] sm:$0xff]
    %v53 = vld [vmem:[#allocation3 + $0x8] sm:$0xff]
    %v54 = vld [vmem:[#allocation6] sm:$0xff]
    %v55 = vld [vmem:[#allocation6 + $0x8] sm:$0xff]
    %v56 = vld [vmem:[#allocation6 + $0x10] sm:$0xff]
    %v57 = vld [vmem:[#allocation6 + $0x18] sm:$0xff]
    %vm58 = vcmask 261120
    %v60 = vsel %vm58, %v52, 0
    %v63 = vsel %vm58, %v53, 0
    %65 = vmatprep.subr.mxu0 0.0
    %66 = vmatpush1.msra.mxu0 %v54
    %67 = vmatprep.subr.mxu0 0.0
    %68 = vmatpush1.msra.mxu0 %v55
    %69 = vmatprep.subr.mxu0 0.0
    %70 = vmatpush1.msra.mxu0 %v56
    %71 = vmatprep.subr.mxu0 0.0
    %72 = vmatpush1.msra.mxu0 %v57
    %73 = vmatprep.subr.mxu0 0.0
    %74 = vmatpush1.msra.mxu0 0.0
    %75 = vmatprep.subr.mxu0 0.0
    %76 = vmatpush1.msra.mxu0 0.0
    %77 = vmatprep.subr.mxu0 0.0
    %78 = vmatpush1.msra.mxu0 0.0
    %79 = vmatprep.subr.mxu0 0.0
    %80 = vmatpush1.msra.mxu0 0.0
    %81 = vmatprep.subr.mxu0 0.0
    %82 = vmatpush1.msra.mxu0 0.0
    %83 = vmatprep.subr.mxu0 0.0
    %84 = vmatpush1.msra.mxu0 0.0
    %85 = vmatprep.subr.mxu0 0.0
    %86 = vmatpush1.msra.mxu0 0.0
    %87 = vmatprep.subr.mxu0 0.0
    %88 = vmatpush1.msra.mxu0 0.0
    %89 = vmatprep.subr.mxu0 0.0
    %90 = vmatpush1.msra.mxu0 0.0
    %91 = vmatprep.subr.mxu0 0.0
    %92 = vmatpush1.msra.mxu0 0.0
    %93 = vmatprep.subr.mxu0 0.0
    %94 = vmatpush1.msra.mxu0 0.0
    %95 = vmatprep.subr.mxu0 0.0
    %96 = vmatpush1.msra.mxu0 0.0
    %97 = vmatprep.subr.mxu0 0.0
    %98 = vmatpush1.msra.mxu0 0.0
    %99 = vmatprep.subr.mxu0 0.0
    %100 = vmatpush1.msra.mxu0 0.0
    %101 = vmatprep.subr.mxu0 0.0
    %102 = vmatpush1.msra.mxu0 0.0
    %103 = vmatprep.subr.mxu0 0.0
    %104 = vmatpush1.msra.mxu0 0.0
    %105 = vmatprep.subr.mxu0 0.0
    %106 = vmatpush1.msra.mxu0 0.0
    %107 = vmatprep.subr.mxu0 0.0
    %108 = vmatpush1.msra.mxu0 0.0
    %109 = vmatprep.subr.mxu0 0.0
    %110 = vmatpush1.msra.mxu0 0.0
    %111 = vmatprep.subr.mxu0 0.0
    %112 = vmatpush1.msra.mxu0 0.0
    %113 = vmatprep.subr.mxu0 0.0
    %114 = vmatpush1.msra.mxu0 0.0
    %115 = vmatprep.subr.mxu0 0.0
    %116 = vmatpush1.msra.mxu0 0.0
    %117 = vmatprep.subr.mxu0 0.0
    %118 = vmatpush1.msra.mxu0 0.0
    %119 = vmatprep.subr.mxu0 0.0
    %120 = vmatpush1.msra.mxu0 0.0
    %121 = vmatprep.subr.mxu0 0.0
    %122 = vmatpush1.msra.mxu0 0.0
    %123 = vmatprep.subr.mxu0 0.0
    %124 = vmatpush1.msra.mxu0 0.0
    %125 = vmatprep.subr.mxu0 0.0
    %126 = vmatpush1.msra.mxu0 0.0
    %127 = vmatprep.subr.mxu0 0.0
    %128 = vmatpush1.msra.mxu0 0.0
    %129 = vmatprep.mubr.f32.mxu0 0.0
    %130 = vmatmul.mubr.f32.gmra.mrb[0].mxu0 %v60
    %v131 = vpop.f32.mrb[0].mxu0
    %v132 = vadd.f32 0.0, %v131
    %v133 = vpop.f32.mrb[0].mxu0
    %134 = vmatprep.mubr.f32.mxu0 0.0
    %135 = vmatmul.mubr.f32.gmra.mrb[0].mxu0 %v63
    %v136 = vpop.f32.mrb[0].mxu0
    %v137 = vadd.f32 0.0, %v136
    %v138 = vpop.f32.mrb[0].mxu0
    %139 = vdwg.mxu0
    %v140 = vadd.f32 %v50, %v132
    %v141 = vadd.f32 %v51, %v137
    %vm142 = vcmask 392192
    %143 = vst.msk [vmem:[#allocation2] sm:$0xff] %vm142, %v140
    %144 = vst.msk [vmem:[#allocation2 + $0x8] sm:$0xff] %vm142, %v141
    // Predicated region
    $region26: #{zero3_linear_forward.1} parent=1 // pred_check
      %p145 = pneg %p43
    $region27: #{zero3_linear_forward.1} parent=1 // pred_check_branch
      %147 = sbr.rel (%p145) target = $region29
    $region28: #{zero3_linear_forward.1} parent=1 // pred_region
      %v148 = vld [vmem:[#allocation2] sm:$0xff]
      %v149 = vld [vmem:[#allocation2 + $0x8] sm:$0xff]
      %v150 = vld [vmem:[%s2] sm:$0x1]
      %v152 = vlaneseq
      %v153 = vshrl.u32 %v152, 7
      %v154 = vsub.s32 0, %v153
      %v155 = vrot.slane %v150, %v154
      %v157 = vadd.f32 %v148, %v155
      %v158 = vadd.f32 %v149, %v155
      %159 = vst.msk [vmem:[#allocation8] sm:$0xff] %vm142, %v157
      %160 = vst.msk [vmem:[#allocation8 + $0x8] sm:$0xff] %vm142, %v158
    $region29: #{zero3_linear_forward.1} parent=1 // pred_fallthru
      _
    // Predicated region
    $region30: #{zero3_linear_forward.1} parent=1 // pred_check
      _
    $region31: #{zero3_linear_forward.1} parent=1 // pred_check_branch
      %162 = sbr.rel (0) target = $region33
    $region32: #{zero3_linear_forward.1} parent=1 // pred_region
      %s164 = ssub.s32 256, 256
      %165 = vsyncadd [#allocation5], %s164
      %s166 = sshll.u32 [#allocation8], 4
      %s167 = int_to_ptr.vmem [resolvable:$true] %s166
      %172 = dma.vmem_to_hbm [thread:$0]  %s167, 256, %s3, [#allocation5], 128, 128, 8
    $region33: #{zero3_linear_forward.1} parent=1 // pred_fallthru
      _
    // Predicated region
    $region34: #{zero3_linear_forward.1} parent=1 // pred_check
      _
    $region35: #{zero3_linear_forward.1} parent=1 // pred_check_branch
      %174 = sbr.rel (0) target = $region37
    $region36: #{zero3_linear_forward.1} parent=1 // pred_region
      %175 = dma.done [#allocation5], 256
    $region37: #{zero3_linear_forward.1} parent=1 // pred_fallthru
      _
    %176 = vsyncpa [#allocation4], 1
    %177 = vsyncpa [#allocation7], 1
    %178 = vsyncpa [#allocation5], 1

</llo_original>
